<compile_context>
chip_gen: v7x
topology: tpu7x:2x2x1
jax: 0.10.0
libtpu: 0.0.40
codegen_flags: <defaults>
</compile_context>

<pallas_src>
import functools

import jax
import jax.numpy as jnp
from jax.experimental import pallas as pl
from jax.experimental.pallas import tpu as pltpu


_LANE_WIDTH = 512  # lane-dense slab width (multiple of 128)


def _round_up(x, m):
    return (x + m - 1) // m * m


def _nll_regression_kernel(y_ref, s_ref, t_ref, out_ref, *,
                           total_valid, block_rows, width, needs_mask):
    y = y_ref[...]          # (block_rows, width) f32  -- predicted means
    x = s_ref[...]          # (block_rows, width) f32  -- sigma^2 logits
    t = t_ref[...]          # (block_rows, width) f32  -- targets

    # Numerically stable softplus: max(x, 0) + log(1 + exp(-|x|)).  Same math
    # as the torch reference's log(1 + exp(x)) but does not overflow for large
    # logits.
    sigma_sq = jnp.maximum(x, 0.0) + jnp.log(1.0 + jnp.exp(-jnp.abs(x))) + 1e-6

    mse = 0.5 * (t - y) ** 2
    # Exact reciprocal keeps parity with the reference divide; flip to
    # approx=True (EUP slot) if ~1e-3 relative error is acceptable.
    inv_sigma = pl.reciprocal(sigma_sq, approx=False)
    loss = 0.5 * jnp.log(sigma_sq) + mse * inv_sigma + 1e-6

    if needs_mask:
        # Zero out tail-padding elements so they don't contribute to the sum.
        i = pl.program_id(0)
        rows = jax.lax.broadcasted_iota(jnp.int32, (block_rows, width), 0)
        cols = jax.lax.broadcasted_iota(jnp.int32, (block_rows, width), 1)
        flat = (i * block_rows + rows) * width + cols
        loss = jnp.where(flat < total_valid, loss, 0.0)

    # Per-block partial sums with vreg-wise (VPU) adds only: collapse groups of
    # 8 rows onto an (8, width) slab.  The final cross-lane/sublane reduction
    # is deferred to the wrapper (off the XLU in the hot loop).
    partial = jnp.sum(loss.reshape(block_rows // 8, 8, width), axis=0)
    out_ref[...] = partial.reshape(1, 8, width)


def nll_regression(pred, target, *, reduction="mean", block_rows=None):
    """Pallas equivalent of NLL_Regression.forward.

    pred:   (N, 2*C) array (first C = y_hat, last C = sigma^2 logits)
    target: (N, C) array
    Returns a float32 scalar (mean or sum of the per-element NLL).
    """
    N, C2 = pred.shape
    if C2 % 2 != 0:
        raise ValueError(
            "When using NLL as regression loss, prediction vector dimension "
            "must be divisible by two.")
    C = C2 // 2
    if target.shape != (N, C):
        raise ValueError("pred / target shape mismatch")
    if reduction not in ("mean", "sum"):
        raise ValueError(f"{reduction} reduction not supported.")

    n_valid = N * C
    width = _LANE_WIDTH
    n_rows = max(1, (n_valid + width - 1) // width)
    if block_rows is None:
        # 512x512 f32 tiles hit ~85% of HBM roofline while staying well inside
        # the scoped-VMEM default on every generation (v5e 16 MiB, v6e/v7x
        # 32 MiB) with double-buffering of all three inputs.
        block_rows = min(512, _round_up(n_rows, 8))
    block_rows = max(8, _round_up(block_rows, 8))
    rows_padded = _round_up(n_rows, block_rows)
    grid = rows_padded // block_rows
    n_padded = rows_padded * width

    def to_slab(x):
        x = x.reshape(-1).astype(jnp.float32)
        x = jnp.pad(x, (0, n_padded - n_valid))
        return x.reshape(rows_padded, width)

    # Split pred in the wrapper (lane-dense slabs; no mid-vreg slicing inside
    # the kernel).
    y_hat = to_slab(pred[:, :C])
    sigma_logits = to_slab(pred[:, C:])
    tgt = to_slab(target)

    kernel = functools.partial(
        _nll_regression_kernel,
        total_valid=n_valid,
        block_rows=block_rows,
        width=width,
        needs_mask=(n_padded != n_valid),
    )

    partials = pl.pallas_call(
        kernel,
        out_shape=jax.ShapeDtypeStruct((grid, 8, width), jnp.float32),
        grid_spec=pltpu.PrefetchScalarGridSpec(
            num_scalar_prefetch=0,
            grid=(grid,),
            in_specs=[
                pl.BlockSpec((block_rows, width), lambda i: (i, 0)),
                pl.BlockSpec((block_rows, width), lambda i: (i, 0)),
                pl.BlockSpec((block_rows, width), lambda i: (i, 0)),
            ],
            out_specs=pl.BlockSpec((1, 8, width), lambda i: (i, 0, 0)),
        ),
        compiler_params=pltpu.CompilerParams(
            dimension_semantics=("parallel",),
        ),
    )(y_hat, sigma_logits, tgt)

    # Final tiny reduction + global mean/sum scaling in the wrapper.
    total = jnp.sum(partials)
    if reduction == "mean":
        total = total / jnp.float32(n_valid)
    return total


def _reference(pred, target, reduction="mean"):
    # Direct transcription of the PyTorch module (naive softplus).
    C = pred.shape[-1] // 2
    y_hat, sig = pred[..., :C], pred[..., C:]
    sig = jnp.log(1.0 + jnp.exp(sig)) + 1e-6
    loss = 0.5 * jnp.log(sig) + 0.5 * (target - y_hat) ** 2 / sig + 1e-6
    return loss.mean() if reduction == "mean" else loss.sum()


if __name__ == "__main__":
    key = jax.random.PRNGKey(0)
    k1, k2, k3, k4 = jax.random.split(key, 4)

    # Case 1: module's nominal small shape (single block, no padding mask).
    N, C = 8, 16
    pred = jax.random.normal(k1, (N, 2 * C), dtype=jnp.float32)
    target = jax.random.normal(k2, (N, C), dtype=jnp.float32)
    out = jax.block_until_ready(nll_regression(pred, target, reduction="mean"))
    ref = _reference(pred, target, "mean")
    assert jnp.allclose(out, ref, rtol=1e-5, atol=1e-5), (out, ref)

    # Case 2: multi-block grid + tail padding/masking + both reductions.
    N2, C2 = 64, 144  # 9216 elements -> 18 slab rows -> 3 blocks of 8 rows
    pred2 = jax.random.normal(k3, (N2, 2 * C2), dtype=jnp.float32)
    target2 = jax.random.normal(k4, (N2, C2), dtype=jnp.float32)
    for red in ("mean", "sum"):
        out2 = jax.block_until_ready(
            nll_regression(pred2, target2, reduction=red, block_rows=8))
        ref2 = _reference(pred2, target2, red)
        assert jnp.allclose(out2, ref2, rtol=1e-4, atol=1e-4), (red, out2, ref2)

    print("KERNEL_OK")
</pallas_src>

<mosaic_0001>
module attributes {stable_mosaic.version = 11 : i64} {
  func.func @_nll_regression_kernel(%arg0: i32, %arg1: memref<8x512xf32, #tpu.memory_space<vmem>>, %arg2: memref<8x512xf32, #tpu.memory_space<vmem>>, %arg3: memref<8x512xf32, #tpu.memory_space<vmem>>, %arg4: memref<1x8x512xf32, #tpu.memory_space<vmem>>) attributes {dimension_semantics = [#tpu.dimension_semantics<parallel>], iteration_bounds = array<i64: 1>, scalar_prefetch = 0 : i64, scratch_operands = 0 : i64, tpu.core_type = #tpu.core_type<tc>, window_params = [{transform_indices = @transform_0, window_bounds = array<i64: 8, 512>}, {transform_indices = @transform_1, window_bounds = array<i64: 8, 512>}, {transform_indices = @transform_2, window_bounds = array<i64: 8, 512>}, {transform_indices = @transform_3, window_bounds = array<i64: 1, 8, 512>}]} {
    %c0 = arith.constant 0 : index
    %c0_0 = arith.constant 0 : index
    %0 = vector.load %arg1[%c0, %c0_0] : memref<8x512xf32, #tpu.memory_space<vmem>>, vector<8x512xf32>
    %c0_1 = arith.constant 0 : index
    %c0_2 = arith.constant 0 : index
    %1 = vector.load %arg2[%c0_1, %c0_2] : memref<8x512xf32, #tpu.memory_space<vmem>>, vector<8x512xf32>
    %c0_3 = arith.constant 0 : index
    %c0_4 = arith.constant 0 : index
    %2 = vector.load %arg3[%c0_3, %c0_4] : memref<8x512xf32, #tpu.memory_space<vmem>>, vector<8x512xf32>
    %cst = arith.constant 0.000000e+00 : f32
    %3 = vector.broadcast %cst : f32 to vector<8x512xf32>
    %4 = arith.maximumf %1, %3 : vector<8x512xf32>
    %5 = math.absf %1 : vector<8x512xf32>
    %cst_5 = arith.constant 0.000000e+00 : f32
    %6 = vector.broadcast %cst_5 : f32 to vector<8x512xf32>
    %7 = arith.subf %6, %5 : vector<8x512xf32>
    %8 = math.exp %7 : vector<8x512xf32>
    %cst_6 = arith.constant 1.000000e+00 : f32
    %9 = vector.broadcast %cst_6 : f32 to vector<8x512xf32>
    %10 = arith.addf %9, %8 : vector<8x512xf32>
    %11 = math.log %10 : vector<8x512xf32>
    %12 = arith.addf %4, %11 : vector<8x512xf32>
    %cst_7 = arith.constant 9.99999997E-7 : f32
    %13 = vector.broadcast %cst_7 : f32 to vector<8x512xf32>
    %14 = arith.addf %12, %13 : vector<8x512xf32>
    %15 = arith.subf %2, %0 : vector<8x512xf32>
    %16 = arith.mulf %15, %15 : vector<8x512xf32>
    %cst_8 = arith.constant 5.000000e-01 : f32
    %17 = vector.broadcast %cst_8 : f32 to vector<8x512xf32>
    %18 = arith.mulf %17, %16 : vector<8x512xf32>
    %19 = tpu.reciprocal %14 : vector<8x512xf32> -> vector<8x512xf32>
    %20 = math.log %14 : vector<8x512xf32>
    %cst_9 = arith.constant 5.000000e-01 : f32
    %21 = vector.broadcast %cst_9 : f32 to vector<8x512xf32>
    %22 = arith.mulf %21, %20 : vector<8x512xf32>
    %23 = arith.mulf %18, %19 : vector<8x512xf32>
    %24 = arith.addf %22, %23 : vector<8x512xf32>
    %cst_10 = arith.constant 9.99999997E-7 : f32
    %25 = vector.broadcast %cst_10 : f32 to vector<8x512xf32>
    %26 = arith.addf %24, %25 : vector<8x512xf32>
    %27 = tpu.iota {dimensions = array<i32: 0>} : vector<8x512xi32>
    %28 = tpu.iota {dimensions = array<i32: 1>} : vector<8x512xi32>
    %c8_i32 = arith.constant 8 : i32
    %29 = arith.muli %arg0, %c8_i32 : i32
    %30 = vector.broadcast %29 : i32 to vector<8x512xi32>
    %31 = arith.addi %30, %27 : vector<8x512xi32>
    %c512_i32 = arith.constant 512 : i32
    %32 = vector.broadcast %c512_i32 : i32 to vector<8x512xi32>
    %33 = arith.muli %31, %32 : vector<8x512xi32>
    %34 = arith.addi %33, %28 : vector<8x512xi32>
    %c128_i32 = arith.constant 128 : i32
    %35 = vector.broadcast %c128_i32 : i32 to vector<8x512xi32>
    %36 = arith.cmpi slt, %34, %35 : vector<8x512xi32>
    %cst_11 = arith.constant 0.000000e+00 : f32
    %37 = vector.broadcast %cst_11 : f32 to vector<8x512xf32>
    %38 = arith.select %36, %26, %37 : vector<8x512xi1>, vector<8x512xf32>
    %39 = vector.shape_cast %38 : vector<8x512xf32> to vector<1x8x512xf32>
    %cst_12 = arith.constant dense<0.000000e+00> : vector<8x512xf32>
    %40 = vector.multi_reduction <add>, %39, %cst_12 [0] : vector<1x8x512xf32> to vector<8x512xf32>
    %41 = vector.shape_cast %40 : vector<8x512xf32> to vector<1x8x512xf32>
    %c0_13 = arith.constant 0 : index
    %c0_14 = arith.constant 0 : index
    %c0_15 = arith.constant 0 : index
    %42 = vector.load %arg4[%c0_13, %c0_14, %c0_15] : memref<1x8x512xf32, #tpu.memory_space<vmem>>, vector<1x8x512xf32>
    tpu.vector_store %arg4[%c0_13, %c0_14, %c0_15], %41 {strides = array<i32>} : memref<1x8x512xf32, #tpu.memory_space<vmem>>, vector<1x8x512xf32>,
    return
  }
  func.func @transform_0(%arg0: i32) -> (i32, i32) {
    %c0_i32 = arith.constant 0 : i32
    %c0_i32_0 = arith.constant 0 : i32
    return %arg0, %c0_i32 : i32, i32
  }
  func.func @transform_1(%arg0: i32) -> (i32, i32) {
    %c0_i32 = arith.constant 0 : i32
    %c0_i32_0 = arith.constant 0 : i32
    return %arg0, %c0_i32 : i32, i32
  }
  func.func @transform_2(%arg0: i32) -> (i32, i32) {
    %c0_i32 = arith.constant 0 : i32
    %c0_i32_0 = arith.constant 0 : i32
    return %arg0, %c0_i32 : i32, i32
  }
  func.func @transform_3(%arg0: i32) -> (i32, i32, i32) {
    %c0_i32 = arith.constant 0 : i32
    %c0_i32_0 = arith.constant 0 : i32
    %c0_i32_1 = arith.constant 0 : i32
    return %arg0, %c0_i32, %c0_i32_0 : i32, i32, i32
  }
}

</mosaic_0001>

<llo_original>
// kernel: tpu_custom_call.1
$region0: #{tpu_custom_call.1}
  #allocation0 [shape = 'u32[]', space=smem, size = 0x4, offset = 0x4, fixed_abs, tag = 'smem constant byte address 0x4 - core index']
  #allocation1 [shape = 'u32[144,128]{1,0:T(1,128)}', space=vmem, size = 0x12000, scoped, tag = 'internal scratch']
  %s0 = inlined_call_operand.hbm [shape: f32[8,512], index: 0, kind: input, shape index: {}]
  %s1 = inlined_call_operand.hbm [shape: f32[8,512], index: 1, kind: input, shape index: {}]
  %s2 = inlined_call_operand.hbm [shape: f32[8,512], index: 2, kind: input, shape index: {}]
  %s3 = inlined_call_operand.hbm [shape: f32[1,8,512], index: 3, kind: output, shape index: {}]
  %s4 = sld [smem:[#allocation0]]
  $region34: #{tpu_custom_call.1} parent=0
    _
  %s6 = ssub.s32 1, %s4
  %s7 = scalar_select 0, %s6, %s4
  $region1: #{tpu_custom_call.1} parent=0
    #allocation2 [shape = 'u8[16384]{0}', space=vmem, size = 0x4000, scoped, tag = 'input window, operand 0, single buffered']
    #allocation3 [shape = 's32[1]{0}', space=sflag, size = 0x4, scoped, tag = 'scoped memory for tpu_custom_call.1']
    #allocation4 [shape = 's32[1]{0}', space=sflag, size = 0x4, scoped, tag = 'scoped memory for tpu_custom_call.1']
    #allocation5 [shape = 'u8[16384]{0}', space=vmem, size = 0x4000, scoped, tag = 'input window, operand 1, single buffered']
    #allocation6 [shape = 's32[1]{0}', space=sflag, size = 0x4, scoped, tag = 'scoped memory for tpu_custom_call.1']
    #allocation7 [shape = 'u8[16384]{0}', space=vmem, size = 0x4000, scoped, tag = 'input window, operand 2, single buffered']
    #allocation8 [shape = 'u8[16384]{0}', space=vmem, size = 0x4000, scoped, tag = 'output window, operand 0, single buffered']
    %8 = vsyncpa [#allocation3], 0
    %9 = vsyncpa [#allocation6], 0
    %10 = vsyncpa [#allocation4], 0
    // Predicated region
    $region2: #{tpu_custom_call.1} parent=1 // pred_check
      _
    $region3: #{tpu_custom_call.1} parent=1 // pred_check_branch
      %12 = sbr.rel (0) target = $region5
    $region4: #{tpu_custom_call.1} parent=1 // pred_region
      %s14 = ssub.s32 512, 512
      %15 = vsyncadd [#allocation3], %s14
      %s17 = sshll.u32 [#allocation2], 4
      %s18 = int_to_ptr.vmem [resolvable:$true] %s17
      %20 = dma.hbm_to_vmem [thread:$0]  %s0, 512, %s18, [#allocation3]
    $region5: #{tpu_custom_call.1} parent=1 // pred_fallthru
      _
    // Predicated region
    $region6: #{tpu_custom_call.1} parent=1 // pred_check
      _
    $region7: #{tpu_custom_call.1} parent=1 // pred_check_branch
      %22 = sbr.rel (0) target = $region9
    $region8: #{tpu_custom_call.1} parent=1 // pred_region
      %s24 = ssub.s32 512, 512
      %25 = vsyncadd [#allocation6], %s24
      %s27 = sshll.u32 [#allocation5], 4
      %s28 = int_to_ptr.vmem [resolvable:$true] %s27
      %30 = dma.hbm_to_vmem [thread:$0]  %s1, 512, %s28, [#allocation6]
    $region9: #{tpu_custom_call.1} parent=1 // pred_fallthru
      _
    // Predicated region
    $region10: #{tpu_custom_call.1} parent=1 // pred_check
      _
    $region11: #{tpu_custom_call.1} parent=1 // pred_check_branch
      %32 = sbr.rel (0) target = $region13
    $region12: #{tpu_custom_call.1} parent=1 // pred_region
      %s34 = ssub.s32 512, 512
      %35 = vsyncadd [#allocation6], %s34
      %s37 = sshll.u32 [#allocation7], 4
      %s38 = int_to_ptr.vmem [resolvable:$true] %s37
      %40 = dma.hbm_to_vmem [thread:$0]  %s2, 512, %s38, [#allocation6]
    $region13: #{tpu_custom_call.1} parent=1 // pred_fallthru
      _
    // Predicated region
    $region14: #{tpu_custom_call.1} parent=1 // pred_check
      _
    $region15: #{tpu_custom_call.1} parent=1 // pred_check_branch
      %42 = sbr.rel (0) target = $region17
    $region16: #{tpu_custom_call.1} parent=1 // pred_region
      %43 = dma.done [#allocation3], 512
    $region17: #{tpu_custom_call.1} parent=1 // pred_fallthru
      _
    // Predicated region
    $region18: #{tpu_custom_call.1} parent=1 // pred_check
      _
    $region19: #{tpu_custom_call.1} parent=1 // pred_check_branch
      %45 = sbr.rel (0) target = $region21
    $region20: #{tpu_custom_call.1} parent=1 // pred_region
      %46 = dma.done [#allocation6], 512
    $region21: #{tpu_custom_call.1} parent=1 // pred_fallthru
      _
    // Predicated region
    $region22: #{tpu_custom_call.1} parent=1 // pred_check
      _
    $region23: #{tpu_custom_call.1} parent=1 // pred_check_branch
      %48 = sbr.rel (0) target = $region25
    $region24: #{tpu_custom_call.1} parent=1 // pred_region
      %49 = dma.done [#allocation6], 512
    $region25: #{tpu_custom_call.1} parent=1 // pred_fallthru
      _
    %v50 = vld [vmem:[#allocation2] sm:$0xff]
    %v51 = vld [vmem:[#allocation2 + $0x8] sm:$0xff]
    %v52 = vld [vmem:[#allocation2 + $0x10] sm:$0xff]
    %v53 = vld [vmem:[#allocation2 + $0x18] sm:$0xff]
    %v54 = vld [vmem:[#allocation5] sm:$0xff]
    %v55 = vld [vmem:[#allocation5 + $0x8] sm:$0xff]
    %v56 = vld [vmem:[#allocation5 + $0x10] sm:$0xff]
    %v57 = vld [vmem:[#allocation5 + $0x18] sm:$0xff]
    %v58 = vld [vmem:[#allocation7] sm:$0xff]
    %v59 = vld [vmem:[#allocation7 + $0x8] sm:$0xff]
    %v60 = vld [vmem:[#allocation7 + $0x10] sm:$0xff]
    %v61 = vld [vmem:[#allocation7 + $0x18] sm:$0xff]
    %v62 = vmax.f32 %v54, 0.0
    %v63 = vmax.f32 %v55, 0.0
    %v64 = vmax.f32 %v56, 0.0
    %v65 = vmax.f32 %v57, 0.0
    %v66 = vand.u32 2147483647, %v54
    %v67 = vand.u32 2147483647, %v55
    %v68 = vand.u32 2147483647, %v56
    %v69 = vand.u32 2147483647, %v57
    %v70 = vsub.f32 0.0, %v66
    %v71 = vsub.f32 0.0, %v67
    %v72 = vsub.f32 0.0, %v68
    %v73 = vsub.f32 0.0, %v69
    %v74 = vmul.f32 %v70, 1.442695
    %v75 = vpow.pop %v74
    %v76 = vmul.f32 %v71, 1.442695
    %v77 = vpow.pop %v76
    %v78 = vmul.f32 %v72, 1.442695
    %v79 = vpow.pop %v78
    %v80 = vmul.f32 %v73, 1.442695
    %v81 = vpow.pop %v80
    %v82 = vadd.f32 %v75, 1.0
    %v83 = vadd.f32 %v77, 1.0
    %v84 = vadd.f32 %v79, 1.0
    %v85 = vadd.f32 %v81, 1.0
    %v86 = vlog2.pop %v82
    %v87 = vmul.f32 %v86, 0.6931472
    %v88 = vlog2.pop %v83
    %v89 = vmul.f32 %v88, 0.6931472
    %v90 = vlog2.pop %v84
    %v91 = vmul.f32 %v90, 0.6931472
    %v92 = vlog2.pop %v85
    %v93 = vmul.f32 %v92, 0.6931472
    %v94 = vadd.f32 %v62, %v87
    %v95 = vadd.f32 %v63, %v89
    %v96 = vadd.f32 %v64, %v91
    %v97 = vadd.f32 %v65, %v93
    %v98 = vadd.f32 %v94, 1e-06
    %v99 = vadd.f32 %v95, 1e-06
    %v100 = vadd.f32 %v96, 1e-06
    %v101 = vadd.f32 %v97, 1e-06
    %v102 = vsub.f32 %v58, %v50
    %v103 = vsub.f32 %v59, %v51
    %v104 = vsub.f32 %v60, %v52
    %v105 = vsub.f32 %v61, %v53
    %v106 = vmul.f32 %v102, %v102
    %v107 = vmul.f32 %v103, %v103
    %v108 = vmul.f32 %v104, %v104
    %v109 = vmul.f32 %v105, %v105
    %v110 = vmul.f32 %v106, 0.5
    %v111 = vmul.f32 %v107, 0.5
    %v112 = vmul.f32 %v108, 0.5
    %v113 = vmul.f32 %v109, 0.5
    %v114 = vrcp.pop %v98
    %v115 = vrcp.pop %v99
    %v116 = vrcp.pop %v100
    %v117 = vrcp.pop %v101
    %v118 = vlog2.pop %v98
    %v119 = vmul.f32 %v118, 0.6931472
    %v120 = vlog2.pop %v99
    %v121 = vmul.f32 %v120, 0.6931472
    %v122 = vlog2.pop %v100
    %v123 = vmul.f32 %v122, 0.6931472
    %v124 = vlog2.pop %v101
    %v125 = vmul.f32 %v124, 0.6931472
    %v126 = vmul.f32 %v119, 0.5
    %v127 = vmul.f32 %v121, 0.5
    %v128 = vmul.f32 %v123, 0.5
    %v129 = vmul.f32 %v125, 0.5
    %v130 = vmul.f32 %v110, %v114
    %v131 = vmul.f32 %v111, %v115
    %v132 = vmul.f32 %v112, %v116
    %v133 = vmul.f32 %v113, %v117
    %v134 = vadd.f32 %v126, %v130
    %v135 = vadd.f32 %v127, %v131
    %v136 = vadd.f32 %v128, %v132
    %v137 = vadd.f32 %v129, %v133
    %v138 = vadd.f32 %v134, 1e-06
    %v139 = vadd.f32 %v135, 1e-06
    %v140 = vadd.f32 %v136, 1e-06
    %v141 = vadd.f32 %v137, 1e-06
    %v142 = vlaneseq
    %v143 = vshrl.u32 %v142, 7
    %v144 = vlaneseq
    %v145 = vand.u32 %v144, 127
    %v146 = vadd.s32 %v145, 128
    %v147 = vadd.s32 %v145, 256
    %v148 = vadd.s32 %v145, 384
    %s149 = smul.u32 0, 8
    %v150 = vstv %s149
    %v151 = vadd.s32 %v150, %v143
    %v152 = vmul.u32 %v151, 512
    %v153 = vadd.s32 %v152, %v145
    %v154 = vadd.s32 %v152, %v146
    %v155 = vadd.s32 %v152, %v147
    %v156 = vadd.s32 %v152, %v148
    %vm157 = vcmp.lt.s32.totalorder %v153, 128
    %vm158 = vcmp.lt.s32.totalorder %v154, 128
    %vm159 = vcmp.lt.s32.totalorder %v155, 128
    %vm160 = vcmp.lt.s32.totalorder %v156, 128
    %v161 = vsel %vm157, %v138, 0.0
    %v162 = vsel %vm158, %v139, 0.0
    %v163 = vsel %vm159, %v140, 0.0
    %v164 = vsel %vm160, %v141, 0.0
    %v165 = vadd.f32 %v161, 0.0
    %v166 = vadd.f32 %v162, 0.0
    %v167 = vadd.f32 %v163, 0.0
    %v168 = vadd.f32 %v164, 0.0
    %169 = vst [vmem:[#allocation8] sm:$0xff] %v165
    %170 = vst [vmem:[#allocation8 + $0x8] sm:$0xff] %v166
    %171 = vst [vmem:[#allocation8 + $0x10] sm:$0xff] %v167
    %172 = vst [vmem:[#allocation8 + $0x18] sm:$0xff] %v168
    // Predicated region
    $region26: #{tpu_custom_call.1} parent=1 // pred_check
      _
    $region27: #{tpu_custom_call.1} parent=1 // pred_check_branch
      %174 = sbr.rel (0) target = $region29
    $region28: #{tpu_custom_call.1} parent=1 // pred_region
      %s176 = ssub.s32 512, 512
      %177 = vsyncadd [#allocation4], %s176
      %s179 = sshll.u32 [#allocation8], 4
      %s180 = int_to_ptr.vmem [resolvable:$true] %s179
      %182 = dma.vmem_to_hbm [thread:$0]  %s180, 512, %s3, [#allocation4]
    $region29: #{tpu_custom_call.1} parent=1 // pred_fallthru
      _
    // Predicated region
    $region30: #{tpu_custom_call.1} parent=1 // pred_check
      _
    $region31: #{tpu_custom_call.1} parent=1 // pred_check_branch
      %184 = sbr.rel (0) target = $region33
    $region32: #{tpu_custom_call.1} parent=1 // pred_region
      %185 = dma.done [#allocation4], 512
    $region33: #{tpu_custom_call.1} parent=1 // pred_fallthru
      _
    %186 = vsyncpa [#allocation3], 1
    %187 = vsyncpa [#allocation6], 1
    %188 = vsyncpa [#allocation4], 1

</llo_original>
